<compile_context>
chip_gen: v6e
topology: v6e:2x2x1
jax: 0.10.0
libtpu: 0.0.40
codegen_flags: <defaults>
</compile_context>

<pallas_src>
import functools

import jax
import jax.numpy as jnp
from jax.experimental import pallas as pl
from jax.experimental.pallas import tpu as pltpu

HIDDEN = 64
LEAKY_SLOPE = 0.01  # PyTorch nn.LeakyReLU default


def _leaky_relu(x):
    # Identical to where(x>0, x, a*x) for 0 < a < 1, but a single vmax.
    return jnp.maximum(x, LEAKY_SLOPE * x)


def _reward_kernel(x_ref, w1_ref, b1_ref, w2_ref, b2_ref, w3_ref, b3_ref,
                   out_ref, *, bt, seg_len, t_pad):
    """One batch tile: rows are (batch, time) flattened; lanes hold pred|alt."""
    x = x_ref[...]                                              # (rows, 2d) cd
    h1 = jnp.dot(x, w1_ref[...],
                 preferred_element_type=jnp.float32) + b1_ref[...]
    h1 = _leaky_relu(h1)                                        # (rows, 128) f32
    h2 = jnp.dot(h1.astype(w2_ref.dtype), w2_ref[...],
                 preferred_element_type=jnp.float32) + b2_ref[...]
    h2 = _leaky_relu(h2)                                        # (rows, 128) f32

    if t_pad != seg_len:
        # Zero out padded time rows so they do not contribute to the sum.
        t_idx = jax.lax.broadcasted_iota(jnp.int32, h2.shape, 0) % t_pad
        h2 = jnp.where(t_idx < seg_len, h2, 0.0)

    # Time-sum before the final projection (linear => order exchangeable).
    # t_pad is a multiple of 8 so this reshape stays sublane-aligned.
    s = h2.reshape(bt, t_pad, 2 * HIDDEN).sum(axis=1)           # (bt, 128)

    # 64 -> 1 projection on the VPU for both segments at once; bias applied
    # after the time-sum, hence scaled by seg_len.
    rw = s * w3_ref[...]                                        # (bt, 128)
    r_pred = rw[:, :HIDDEN].sum(axis=-1, keepdims=True)         # (bt, 1)
    r_alt = rw[:, HIDDEN:].sum(axis=-1, keepdims=True)          # (bt, 1)
    out_ref[...] = (jnp.concatenate([r_pred, r_alt], axis=1)
                    + seg_len * b3_ref[...])                    # (bt, 2)


def init_params(key, obs_dim, act_dim, hidden=HIDDEN):
    """Deterministic synthetic parameters (PyTorch-Linear-like uniform init)."""
    d = obs_dim + act_dim
    ks = jax.random.split(key, 6)

    def lin(kw, kb, fan_in, fan_out):
        bound = 1.0 / jnp.sqrt(jnp.float32(fan_in))
        w = jax.random.uniform(kw, (fan_in, fan_out), jnp.float32, -bound, bound)
        b = jax.random.uniform(kb, (1, fan_out), jnp.float32, -bound, bound)
        return w, b

    w1, b1 = lin(ks[0], ks[1], d, hidden)
    w2, b2 = lin(ks[2], ks[3], hidden, hidden)
    w3, b3 = lin(ks[4], ks[5], hidden, 1)
    return dict(w1=w1, b1=b1, w2=w2, b2=b2, w3=w3, b3=b3)


def _choose_tiling(B, t_pad, target_rows):
    """Pick (bt, B_pad).  Output block (bt, 2) needs bt % 8 == 0 or bt == B_pad;
    input rows bt*t_pad are always 8-aligned because t_pad % 8 == 0."""
    if B * t_pad <= target_rows:
        # Whole batch fits in one resident tile.  Prefer two tiles (v7x 2 TCs)
        # when the split keeps the output block 8-aligned.
        half = B // 2
        if half >= 8 and half % 8 == 0 and B % half == 0:
            return half, B
        return B, B

    # Need to tile: pad the batch to a multiple of 8 so aligned tiles exist.
    b_pad = ((B + 7) // 8) * 8
    bt = 8
    for cand in range(8, b_pad + 1, 8):
        if b_pad % cand == 0 and cand * t_pad <= target_rows:
            bt = cand
    if b_pad // bt < 2:
        # Guarantee at least two grid tiles when possible.
        for cand in range(bt - 8, 7, -8):
            if b_pad % cand == 0:
                bt = cand
                break
    return bt, b_pad


def comparison_reward_predictor(params, obs, act, alt_obs, alt_act,
                                *, compute_dtype=jnp.bfloat16):
    """obs/alt_obs: (B, T, obs_dim); act/alt_act: (B, T, act_dim) -> (B, 2) f32.

    compute_dtype casts only the MXU inputs (x, w1, w2); all accumulation,
    biases and element-wise math stay in f32 (safe on v5e/v6e/v7x).
    """
    B, T, obs_dim = obs.shape
    act_dim = act.shape[-1]
    d = obs_dim + act_dim
    cd = jnp.dtype(compute_dtype)

    # --- generation-aware sizing (v7x: 64 MiB VMEM/TC; v5e/v6e: 128 MiB) ----
    try:
        vmem_cap = int(pltpu.get_tpu_info().vmem_capacity_bytes)
    except Exception:
        vmem_cap = 64 * 1024 * 1024
    vmem_limit = int(min(64 * 1024 * 1024, (vmem_cap * 3) // 4))
    target_rows = 4096 if vmem_cap >= 100 * 1024 * 1024 else 2048

    t_pad = ((T + 7) // 8) * 8
    bt, b_pad = _choose_tiling(B, t_pad, target_rows)
    rows_per_tile = bt * t_pad
    grid = (b_pad // bt,)

    # --- pack inputs: pred features in [0,d), alt features in [d,2d) --------
    x = jnp.concatenate([obs, act, alt_obs, alt_act], axis=-1)   # (B, T, 2d)
    if t_pad != T:
        x = jnp.pad(x, ((0, 0), (0, t_pad - T), (0, 0)))
    if b_pad != B:
        x = jnp.pad(x, ((0, b_pad - B), (0, 0), (0, 0)))
    x = x.reshape(b_pad * t_pad, 2 * d).astype(cd)

    # --- block-diagonal weights: pred -> lanes [0,64), alt -> lanes [64,128)
    w1 = params["w1"].astype(jnp.float32)
    w2 = params["w2"].astype(jnp.float32)
    w1_bd = jnp.zeros((2 * d, 2 * HIDDEN), jnp.float32)
    w1_bd = w1_bd.at[:d, :HIDDEN].set(w1).at[d:, HIDDEN:].set(w1).astype(cd)
    w2_bd = jnp.zeros((2 * HIDDEN, 2 * HIDDEN), jnp.float32)
    w2_bd = (w2_bd.at[:HIDDEN, :HIDDEN].set(w2)
                  .at[HIDDEN:, HIDDEN:].set(w2).astype(cd))
    b1_p = jnp.tile(params["b1"].reshape(1, HIDDEN), (1, 2)).astype(jnp.float32)
    b2_p = jnp.tile(params["b2"].reshape(1, HIDDEN), (1, 2)).astype(jnp.float32)
    w3_p = jnp.tile(params["w3"].reshape(1, HIDDEN), (1, 2)).astype(jnp.float32)
    b3 = params["b3"].reshape(1, 1).astype(jnp.float32)

    data_spec = pl.BlockSpec((rows_per_tile, 2 * d), lambda i: (i, 0))

    def const_spec(a):
        return pl.BlockSpec(a.shape, lambda i: (0, 0))

    itemsize = cd.itemsize
    flops = 2 * 2 * B * T * (d * HIDDEN + HIDDEN * HIDDEN + HIDDEN)
    weight_bytes = ((w1_bd.size + w2_bd.size) * itemsize
                    + (b1_p.size + b2_p.size + w3_p.size + b3.size) * 4)
    bytes_accessed = x.size * itemsize + weight_bytes + b_pad * 2 * 4
    cost = pl.CostEstimate(flops=flops, transcendentals=0,
                           bytes_accessed=bytes_accessed)

    out = pl.pallas_call(
        functools.partial(_reward_kernel, bt=bt, seg_len=T, t_pad=t_pad),
        out_shape=jax.ShapeDtypeStruct((b_pad, 2), jnp.float32),
        grid=grid,
        in_specs=[data_spec,
                  const_spec(w1_bd), const_spec(b1_p),
                  const_spec(w2_bd), const_spec(b2_p),
                  const_spec(w3_p), const_spec(b3)],
        out_specs=pl.BlockSpec((bt, 2), lambda i: (i, 0)),
        compiler_params=pltpu.CompilerParams(
            dimension_semantics=("parallel",),     # shard batch tiles over TCs
            vmem_limit_bytes=vmem_limit),
        cost_estimate=cost,
    )(x, w1_bd, b1_p, w2_bd, b2_p, w3_p, b3)

    return out[:B] if b_pad != B else out


def _reference(params, obs, act, alt_obs, alt_act):
    """Pure-JAX f32 reference of the PyTorch forward for verification."""
    hi = jax.lax.Precision.HIGHEST

    def mlp(o, a):
        x = jnp.concatenate([o, a], axis=-1)
        h = _leaky_relu(jnp.dot(x, params["w1"], precision=hi) + params["b1"])
        h = _leaky_relu(jnp.dot(h, params["w2"], precision=hi) + params["b2"])
        return (jnp.dot(h, params["w3"], precision=hi) + params["b3"])[..., 0]

    q = mlp(obs, act).sum(axis=1)
    q_alt = mlp(alt_obs, alt_act).sum(axis=1)
    return jnp.stack([q, q_alt], axis=1)                        # (B, 2)


if __name__ == "__main__":
    B, T, OBS_DIM, ACT_DIM = 2, 8, 16, 4

    key = jax.random.PRNGKey(0)
    k_p, k_o, k_a, k_ao, k_aa = jax.random.split(key, 5)

    params = init_params(k_p, OBS_DIM, ACT_DIM)
    obs = jax.random.normal(k_o, (B, T, OBS_DIM), jnp.float32)
    act = jax.random.normal(k_a, (B, T, ACT_DIM), jnp.float32)
    alt_obs = jax.random.normal(k_ao, (B, T, OBS_DIM), jnp.float32)
    alt_act = jax.random.normal(k_aa, (B, T, ACT_DIM), jnp.float32)

    ref = _reference(params, obs, act, alt_obs, alt_act)

    # f32 MXU-input path (tight check).
    logits_f32 = comparison_reward_predictor(
        params, obs, act, alt_obs, alt_act, compute_dtype=jnp.float32)
    jax.block_until_ready(logits_f32)
    assert logits_f32.shape == (B, 2)
    assert jnp.allclose(logits_f32, ref, atol=1e-3, rtol=1e-3), (logits_f32, ref)

    # Default bf16 MXU-input path (f32 accumulation): looser tolerance.
    logits_bf16 = comparison_reward_predictor(params, obs, act, alt_obs, alt_act)
    jax.block_until_ready(logits_bf16)
    assert logits_bf16.shape == (B, 2)
    assert jnp.allclose(logits_bf16, ref, atol=1e-1, rtol=1e-1), (logits_bf16, ref)

    print("KERNEL_OK")
</pallas_src>

<mosaic_0001>
module attributes {stable_mosaic.version = 11 : i64} {
  func.func @_reward_kernel(%arg0: i32, %arg1: memref<16x40xf32, #tpu.memory_space<vmem>>, %arg2: memref<40x128xf32, #tpu.memory_space<vmem>>, %arg3: memref<1x128xf32, #tpu.memory_space<vmem>>, %arg4: memref<128x128xf32, #tpu.memory_space<vmem>>, %arg5: memref<1x128xf32, #tpu.memory_space<vmem>>, %arg6: memref<1x128xf32, #tpu.memory_space<vmem>>, %arg7: memref<1x1xf32, #tpu.memory_space<vmem>>, %arg8: memref<2x2xf32, #tpu.memory_space<vmem>>) attributes {dimension_semantics = [#tpu.dimension_semantics<parallel>], iteration_bounds = array<i64: 1>, scalar_prefetch = 0 : i64, scratch_operands = 0 : i64, tpu.core_type = #tpu.core_type<tc>, window_params = [{transform_indices = @transform_0, window_bounds = array<i64: 16, 40>}, {pipeline_mode = #tpu.pipeline_mode<synchronous>, transform_indices = @transform_1, window_bounds = array<i64: 40, 128>}, {pipeline_mode = #tpu.pipeline_mode<synchronous>, transform_indices = @transform_2, window_bounds = array<i64: 1, 128>}, {pipeline_mode = #tpu.pipeline_mode<synchronous>, transform_indices = @transform_3, window_bounds = array<i64: 128, 128>}, {pipeline_mode = #tpu.pipeline_mode<synchronous>, transform_indices = @transform_4, window_bounds = array<i64: 1, 128>}, {pipeline_mode = #tpu.pipeline_mode<synchronous>, transform_indices = @transform_5, window_bounds = array<i64: 1, 128>}, {pipeline_mode = #tpu.pipeline_mode<synchronous>, transform_indices = @transform_6, window_bounds = array<i64: 1, 1>}, {transform_indices = @transform_7, window_bounds = array<i64: 2, 2>}]} {
    %c0 = arith.constant 0 : index
    %c0_0 = arith.constant 0 : index
    %0 = vector.load %arg1[%c0, %c0_0] : memref<16x40xf32, #tpu.memory_space<vmem>>, vector<16x40xf32>
    %c0_1 = arith.constant 0 : index
    %c0_2 = arith.constant 0 : index
    %1 = vector.load %arg2[%c0_1, %c0_2] : memref<40x128xf32, #tpu.memory_space<vmem>>, vector<40x128xf32>
    %cst = arith.constant dense<0.000000e+00> : vector<16x128xf32>
    %2 = tpu.matmul %0, %1, %cst {dimension_numbers = #tpu.dot_dimension_numbers<[1], [0], [0], [1], [0, 0, 1, 1], [], []>} : vector<16x40xf32>, vector<40x128xf32>, vector<16x128xf32> -> vector<16x128xf32>
    %c0_3 = arith.constant 0 : index
    %c0_4 = arith.constant 0 : index
    %3 = vector.load %arg3[%c0_3, %c0_4] : memref<1x128xf32, #tpu.memory_space<vmem>>, vector<1x128xf32>
    %4 = vector.broadcast %3 : vector<1x128xf32> to vector<16x128xf32>
    %5 = arith.addf %2, %4 : vector<16x128xf32>
    %cst_5 = arith.constant 0.00999999977 : f32
    %6 = vector.broadcast %cst_5 : f32 to vector<16x128xf32>
    %7 = arith.mulf %6, %5 : vector<16x128xf32>
    %8 = arith.maximumf %5, %7 : vector<16x128xf32>
    %c0_6 = arith.constant 0 : index
    %c0_7 = arith.constant 0 : index
    %9 = vector.load %arg4[%c0_6, %c0_7] : memref<128x128xf32, #tpu.memory_space<vmem>>, vector<128x128xf32>
    %cst_8 = arith.constant dense<0.000000e+00> : vector<16x128xf32>
    %10 = tpu.matmul %8, %9, %cst_8 {dimension_numbers = #tpu.dot_dimension_numbers<[1], [0], [0], [1], [0, 0, 1, 1], [], []>} : vector<16x128xf32>, vector<128x128xf32>, vector<16x128xf32> -> vector<16x128xf32>
    %c0_9 = arith.constant 0 : index
    %c0_10 = arith.constant 0 : index
    %11 = vector.load %arg5[%c0_9, %c0_10] : memref<1x128xf32, #tpu.memory_space<vmem>>, vector<1x128xf32>
    %12 = vector.broadcast %11 : vector<1x128xf32> to vector<16x128xf32>
    %13 = arith.addf %10, %12 : vector<16x128xf32>
    %cst_11 = arith.constant 0.00999999977 : f32
    %14 = vector.broadcast %cst_11 : f32 to vector<16x128xf32>
    %15 = arith.mulf %14, %13 : vector<16x128xf32>
    %16 = arith.maximumf %13, %15 : vector<16x128xf32>
    %17 = vector.shape_cast %16 : vector<16x128xf32> to vector<2x8x128xf32>
    %cst_12 = arith.constant dense<0.000000e+00> : vector<2x128xf32>
    %18 = vector.multi_reduction <add>, %17, %cst_12 [1] : vector<2x8x128xf32> to vector<2x128xf32>
    %c0_13 = arith.constant 0 : index
    %c0_14 = arith.constant 0 : index
    %19 = vector.load %arg6[%c0_13, %c0_14] : memref<1x128xf32, #tpu.memory_space<vmem>>, vector<1x128xf32>
    %20 = vector.broadcast %19 : vector<1x128xf32> to vector<2x128xf32>
    %21 = arith.mulf %18, %20 : vector<2x128xf32>
    %22 = vector.extract_strided_slice %21 {offsets = [0, 0], sizes = [2, 64], strides = [1, 1]} : vector<2x128xf32> to vector<2x64xf32>
    %cst_15 = arith.constant dense<0.000000e+00> : vector<2xf32>
    %23 = vector.multi_reduction <add>, %22, %cst_15 [1] : vector<2x64xf32> to vector<2xf32>
    %24 = vector.shape_cast %23 : vector<2xf32> to vector<2x1xf32>
    %25 = vector.extract_strided_slice %21 {offsets = [0, 64], sizes = [2, 64], strides = [1, 1]} : vector<2x128xf32> to vector<2x64xf32>
    %cst_16 = arith.constant dense<0.000000e+00> : vector<2xf32>
    %26 = vector.multi_reduction <add>, %25, %cst_16 [1] : vector<2x64xf32> to vector<2xf32>
    %27 = vector.shape_cast %26 : vector<2xf32> to vector<2x1xf32>
    %28 = tpu.concatenate %24, %27 in 1 : vector<2x1xf32>, vector<2x1xf32> -> vector<2x2xf32>
    %c0_17 = arith.constant 0 : index
    %c0_18 = arith.constant 0 : index
    %29 = vector.load %arg7[%c0_17, %c0_18] : memref<1x1xf32, #tpu.memory_space<vmem>>, vector<1x1xf32>
    %cst_19 = arith.constant 8.000000e+00 : f32
    %30 = vector.broadcast %cst_19 : f32 to vector<1x1xf32>
    %31 = arith.mulf %30, %29 : vector<1x1xf32>
    %32 = vector.broadcast %31 : vector<1x1xf32> to vector<2x2xf32>
    %33 = arith.addf %28, %32 : vector<2x2xf32>
    %c0_20 = arith.constant 0 : index
    %c0_21 = arith.constant 0 : index
    %34 = vector.load %arg8[%c0_20, %c0_21] : memref<2x2xf32, #tpu.memory_space<vmem>>, vector<2x2xf32>
    tpu.vector_store %arg8[%c0_20, %c0_21], %33 {strides = array<i32>} : memref<2x2xf32, #tpu.memory_space<vmem>>, vector<2x2xf32>,
    return
  }
  func.func @transform_0(%arg0: i32) -> (i32, i32) {
    %c0_i32 = arith.constant 0 : i32
    %c0_i32_0 = arith.constant 0 : i32
    return %arg0, %c0_i32 : i32, i32
  }
  func.func @transform_1(%arg0: i32) -> (i32, i32) {
    %c0_i32 = arith.constant 0 : i32
    %c0_i32_0 = arith.constant 0 : i32
    %c0_i32_1 = arith.constant 0 : i32
    return %c0_i32, %c0_i32_0 : i32, i32
  }
  func.func @transform_2(%arg0: i32) -> (i32, i32) {
    %c0_i32 = arith.constant 0 : i32
    %c0_i32_0 = arith.constant 0 : i32
    %c0_i32_1 = arith.constant 0 : i32
    return %c0_i32, %c0_i32_0 : i32, i32
  }
  func.func @transform_3(%arg0: i32) -> (i32, i32) {
    %c0_i32 = arith.constant 0 : i32
    %c0_i32_0 = arith.constant 0 : i32
    %c0_i32_1 = arith.constant 0 : i32
    return %c0_i32, %c0_i32_0 : i32, i32
  }
  func.func @transform_4(%arg0: i32) -> (i32, i32) {
    %c0_i32 = arith.constant 0 : i32
    %c0_i32_0 = arith.constant 0 : i32
    %c0_i32_1 = arith.constant 0 : i32
    return %c0_i32, %c0_i32_0 : i32, i32
  }
  func.func @transform_5(%arg0: i32) -> (i32, i32) {
    %c0_i32 = arith.constant 0 : i32
    %c0_i32_0 = arith.constant 0 : i32
    %c0_i32_1 = arith.constant 0 : i32
    return %c0_i32, %c0_i32_0 : i32, i32
  }
  func.func @transform_6(%arg0: i32) -> (i32, i32) {
    %c0_i32 = arith.constant 0 : i32
    %c0_i32_0 = arith.constant 0 : i32
    %c0_i32_1 = arith.constant 0 : i32
    return %c0_i32, %c0_i32_0 : i32, i32
  }
  func.func @transform_7(%arg0: i32) -> (i32, i32) {
    %c0_i32 = arith.constant 0 : i32
    %c0_i32_0 = arith.constant 0 : i32
    return %arg0, %c0_i32 : i32, i32
  }
}

</mosaic_0001>

<llo_original>
// kernel: tpu_custom_call.1
$region0: #{tpu_custom_call.1}
  #allocation0 [shape = 'u32[]', space=smem, size = 0x4, offset = 0x4, fixed_abs, tag = 'smem constant byte address 0x4 - core index']
  #allocation1 [shape = 'u32[144,128]{1,0:T(1,128)}', space=vmem, size = 0x12000, scoped, tag = 'internal scratch']
  #allocation2 [shape = 'f32[1,1]{1,0:T(1,128)S(1)}', space=vmem, size = 0x200, scoped, tag = 'scoped memory for tpu_custom_call.1']
  %s0 = inlined_call_operand.hbm [shape: f32[16,40], index: 0, kind: input, shape index: {}]
  %s1 = inlined_call_operand.hbm [shape: f32[40,128], index: 1, kind: input, shape index: {}]
  %s2 = inlined_call_operand.vmem [shape: f32[1,128], index: 2, kind: input, shape index: {}]
  %s3 = inlined_call_operand.hbm [shape: f32[128,128], index: 3, kind: input, shape index: {}]
  %s4 = inlined_call_operand.vmem [shape: f32[1,128], index: 4, kind: input, shape index: {}]
  %s5 = inlined_call_operand.vmem [shape: f32[1,128], index: 5, kind: input, shape index: {}]
  %s6 = inlined_call_operand.<no memory space> [shape: f32[1,1], index: 6, kind: input, shape index: {}]
  %s7 = inlined_call_operand.hbm [shape: f32[2,2], index: 7, kind: output, shape index: {}]
  %s8 = sld [smem:[#allocation0]]
  $region50: #{tpu_custom_call.1} parent=0
    _
  %s10 = ssub.s32 1, %s8
  %s11 = scalar_select 0, %s10, %s8
  %v12 = vstv %s6
  %13 = vst [vmem:[#allocation2] sm:$0x1] %v12
  $region1: #{tpu_custom_call.1} parent=0
    #allocation3 [shape = 'u8[8192]{0}', space=vmem, size = 0x2000, scoped, tag = 'input window, operand 0, single buffered']
    #allocation4 [shape = 's32[1]{0}', space=sflag, size = 0x4, scoped, tag = 'scoped memory for tpu_custom_call.1']
    #allocation5 [shape = 's32[1]{0}', space=sflag, size = 0x4, scoped, tag = 'scoped memory for tpu_custom_call.1']
    #allocation6 [shape = 'u8[20480]{0}', space=vmem, size = 0x5000, scoped, tag = 'input window, operand 1, single buffered']
    #allocation7 [shape = 's32[1]{0}', space=sflag, size = 0x4, scoped, tag = 'scoped memory for tpu_custom_call.1']
    #allocation8 [shape = 'u8[65536]{0}', space=vmem, size = 0x10000, scoped, tag = 'input window, operand 3, single buffered']
    #allocation9 [shape = 'u8[1024]{0}', space=vmem, size = 0x400, scoped, tag = 'output window, operand 0, single buffered']
    %14 = vsyncpa [#allocation4], 0
    %15 = vsyncpa [#allocation7], 0
    %16 = vsyncpa [#allocation5], 0
    // Predicated region
    $region2: #{tpu_custom_call.1} parent=1 // pred_check
      _
    $region3: #{tpu_custom_call.1} parent=1 // pred_check_branch
      %18 = sbr.rel (0) target = $region5
    $region4: #{tpu_custom_call.1} parent=1 // pred_region
      %s20 = ssub.s32 256, 256
      %21 = vsyncadd [#allocation4], %s20
      %s22 = sshll.u32 [#allocation3], 4
      %s23 = int_to_ptr.vmem [resolvable:$true] %s22
      %28 = dma.hbm_to_vmem [thread:$0]  %s0, 256, %s23, [#allocation4], 128, 128, 8
    $region5: #{tpu_custom_call.1} parent=1 // pred_fallthru
      _
    // Predicated region
    $region6: #{tpu_custom_call.1} parent=1 // pred_check
      _
    $region7: #{tpu_custom_call.1} parent=1 // pred_check_branch
      %30 = sbr.rel (0) target = $region9
    $region8: #{tpu_custom_call.1} parent=1 // pred_region
      %s32 = ssub.s32 640, 640
      %33 = vsyncadd [#allocation7], %s32
      %s34 = sshll.u32 [#allocation6], 4
      %s35 = int_to_ptr.vmem [resolvable:$true] %s34
      %40 = dma.hbm_to_vmem [thread:$0]  %s1, 640, %s35, [#allocation7], 128, 128, 8
    $region9: #{tpu_custom_call.1} parent=1 // pred_fallthru
      _
    // Predicated region
    $region10: #{tpu_custom_call.1} parent=1 // pred_check
      _
    $region11: #{tpu_custom_call.1} parent=1 // pred_check_branch
      %42 = sbr.rel (0) target = $region13
    $region12: #{tpu_custom_call.1} parent=1 // pred_region
      _
    $region13: #{tpu_custom_call.1} parent=1 // pred_fallthru
      _
    // Predicated region
    $region14: #{tpu_custom_call.1} parent=1 // pred_check
      _
    $region15: #{tpu_custom_call.1} parent=1 // pred_check_branch
      %44 = sbr.rel (0) target = $region17
    $region16: #{tpu_custom_call.1} parent=1 // pred_region
      %s46 = ssub.s32 2048, 2048
      %47 = vsyncadd [#allocation7], %s46
      %s48 = sshll.u32 [#allocation8], 4
      %s49 = int_to_ptr.vmem [resolvable:$true] %s48
      %54 = dma.hbm_to_vmem [thread:$0]  %s3, 2048, %s49, [#allocation7], 128, 128, 8
    $region17: #{tpu_custom_call.1} parent=1 // pred_fallthru
      _
    // Predicated region
    $region18: #{tpu_custom_call.1} parent=1 // pred_check
      _
    $region19: #{tpu_custom_call.1} parent=1 // pred_check_branch
      %56 = sbr.rel (0) target = $region21
    $region20: #{tpu_custom_call.1} parent=1 // pred_region
      _
    $region21: #{tpu_custom_call.1} parent=1 // pred_fallthru
      _
    // Predicated region
    $region22: #{tpu_custom_call.1} parent=1 // pred_check
      _
    $region23: #{tpu_custom_call.1} parent=1 // pred_check_branch
      %58 = sbr.rel (0) target = $region25
    $region24: #{tpu_custom_call.1} parent=1 // pred_region
      _
    $region25: #{tpu_custom_call.1} parent=1 // pred_fallthru
      _
    // Predicated region
    $region26: #{tpu_custom_call.1} parent=1 // pred_check
      _
    $region27: #{tpu_custom_call.1} parent=1 // pred_check_branch
      %60 = sbr.rel (0) target = $region29
    $region28: #{tpu_custom_call.1} parent=1 // pred_region
      _
    $region29: #{tpu_custom_call.1} parent=1 // pred_fallthru
      _
    // Predicated region
    $region30: #{tpu_custom_call.1} parent=1 // pred_check
      _
    $region31: #{tpu_custom_call.1} parent=1 // pred_check_branch
      %62 = sbr.rel (0) target = $region33
    $region32: #{tpu_custom_call.1} parent=1 // pred_region
      %63 = dma.done [#allocation4], 256
    $region33: #{tpu_custom_call.1} parent=1 // pred_fallthru
      _
    // Predicated region
    $region34: #{tpu_custom_call.1} parent=1 // pred_check
      _
    $region35: #{tpu_custom_call.1} parent=1 // pred_check_branch
      %65 = sbr.rel (0) target = $region37
    $region36: #{tpu_custom_call.1} parent=1 // pred_region
      %66 = dma.done [#allocation7], 640
    $region37: #{tpu_custom_call.1} parent=1 // pred_fallthru
      _
    // Predicated region
    $region38: #{tpu_custom_call.1} parent=1 // pred_check
      _
    $region39: #{tpu_custom_call.1} parent=1 // pred_check_branch
      %68 = sbr.rel (0) target = $region41
    $region40: #{tpu_custom_call.1} parent=1 // pred_region
      %69 = dma.done [#allocation7], 2048
    $region41: #{tpu_custom_call.1} parent=1 // pred_fallthru
      _
    %v70 = vld [vmem:[#allocation3] sm:$0xff]
    %v71 = vld [vmem:[#allocation3 + $0x8] sm:$0xff]
    %v72 = vld [vmem:[#allocation6] sm:$0xff]
    %v73 = vld [vmem:[#allocation6 + $0x8] sm:$0xff]
    %v74 = vld [vmem:[#allocation6 + $0x10] sm:$0xff]
    %v75 = vld [vmem:[#allocation6 + $0x18] sm:$0xff]
    %v76 = vld [vmem:[#allocation6 + $0x20] sm:$0xff]
    %v77 = vld [vmem:[%s2] sm:$0x1]
    %v79 = vlaneseq
    %v80 = vshrl.u32 %v79, 7
    %v81 = vsub.s32 0, %v80
    %v82 = vrot.slane %v77, %v81
    %vm84 = vcmask 326656
    %v86 = vsel %vm84, %v70, 0
    %v89 = vsel %vm84, %v71, 0
    %91 = vmatprep.subr.mxu0 0.0
    %92 = vmatpush1.msra.mxu0 0.0
    %93 = vmatprep.subr.mxu0 0.0
    %94 = vmatpush1.msra.mxu0 0.0
    %95 = vmatprep.subr.mxu0 0.0
    %96 = vmatpush1.msra.mxu0 0.0
    %97 = vmatprep.subr.mxu0 0.0
    %98 = vmatpush1.msra.mxu0 0.0
    %99 = vmatprep.subr.mxu0 0.0
    %100 = vmatpush1.msra.mxu0 0.0
    %101 = vmatprep.subr.mxu0 0.0
    %102 = vmatpush1.msra.mxu0 0.0
    %103 = vmatprep.subr.mxu0 0.0
    %104 = vmatpush1.msra.mxu0 0.0
    %105 = vmatprep.subr.mxu0 0.0
    %106 = vmatpush1.msra.mxu0 0.0
    %107 = vmatprep.subr.mxu0 0.0
    %108 = vmatpush1.msra.mxu0 0.0
    %109 = vmatprep.subr.mxu0 0.0
    %110 = vmatpush1.msra.mxu0 0.0
    %111 = vmatprep.subr.mxu0 0.0
    %112 = vmatpush1.msra.mxu0 0.0
    %113 = vmatprep.subr.mxu0 0.0
    %114 = vmatpush1.msra.mxu0 %v76
    %115 = vmatprep.subr.mxu0 0.0
    %116 = vmatpush1.msra.mxu0 %v75
    %117 = vmatprep.subr.mxu0 0.0
    %118 = vmatpush1.msra.mxu0 %v74
    %119 = vmatprep.subr.mxu0 0.0
    %120 = vmatpush1.msra.mxu0 %v73
    %121 = vmatprep.subr.mxu0 0.0
    %122 = vmatpush1.msra.mxu0 %v72
    %123 = vmatprep.subr.mxu0 0.0
    %124 = vmatpush2.msra.mxu0 0.0
    %125 = vmatprep.subr.mxu0 0.0
    %126 = vmatpush2.msra.mxu0 0.0
    %127 = vmatprep.subr.mxu0 0.0
    %128 = vmatpush2.msra.mxu0 0.0
    %129 = vmatprep.subr.mxu0 0.0
    %130 = vmatpush2.msra.mxu0 0.0
    %131 = vmatprep.subr.mxu0 0.0
    %132 = vmatpush2.msra.mxu0 0.0
    %133 = vmatprep.subr.mxu0 0.0
    %134 = vmatpush2.msra.mxu0 0.0
    %135 = vmatprep.subr.mxu0 0.0
    %136 = vmatpush2.msra.mxu0 0.0
    %137 = vmatprep.subr.mxu0 0.0
    %138 = vmatpush2.msra.mxu0 0.0
    %139 = vmatprep.subr.mxu0 0.0
    %140 = vmatpush2.msra.mxu0 0.0
    %141 = vmatprep.subr.mxu0 0.0
    %142 = vmatpush2.msra.mxu0 0.0
    %143 = vmatprep.subr.mxu0 0.0
    %144 = vmatpush2.msra.mxu0 0.0
    %145 = vmatprep.subr.mxu0 0.0
    %146 = vmatpush2.msra.mxu0 0.0
    %147 = vmatprep.subr.mxu0 0.0
    %148 = vmatpush2.msra.mxu0 0.0
    %149 = vmatprep.subr.mxu0 0.0
    %150 = vmatpush2.msra.mxu0 0.0
    %151 = vmatprep.subr.mxu0 0.0
    %152 = vmatpush2.msra.mxu0 0.0
    %153 = vmatprep.subr.mxu0 0.0
    %154 = vmatpush2.msra.mxu0 0.0
    %155 = vmatprep.mubr.f32.mxu0 0.0
    %156 = vmatmul.mubr.f32.gmra.mxu0 %v86
    %v157 = vpop.f32.mrf.mxu0
    %v158 = vadd.f32 %v82, %v157
    %v159 = vpop.f32.mrf.mxu0
    %160 = vmatprep.mubr.f32.mxu0 0.0
    %161 = vmatmul.mubr.f32.gmra.mxu0 %v89
    %v162 = vpop.f32.mrf.mxu0
    %v163 = vadd.f32 %v82, %v162
    %v164 = vpop.f32.mrf.mxu0
    %165 = vdwg.mxu0
    %v166 = vmul.f32 %v158, 0.01
    %v167 = vmul.f32 %v163, 0.01
    %v168 = vmax.f32 %v158, %v166
    %v169 = vmax.f32 %v163, %v167
    %v170 = vld [vmem:[#allocation8] sm:$0xff]
    %v171 = vld [vmem:[#allocation8 + $0x8] sm:$0xff]
    %v172 = vld [vmem:[#allocation8 + $0x10] sm:$0xff]
    %v173 = vld [vmem:[#allocation8 + $0x18] sm:$0xff]
    %v174 = vld [vmem:[#allocation8 + $0x20] sm:$0xff]
    %v175 = vld [vmem:[#allocation8 + $0x28] sm:$0xff]
    %v176 = vld [vmem:[#allocation8 + $0x30] sm:$0xff]
    %v177 = vld [vmem:[#allocation8 + $0x38] sm:$0xff]
    %v178 = vld [vmem:[#allocation8 + $0x40] sm:$0xff]
    %v179 = vld [vmem:[#allocation8 + $0x48] sm:$0xff]
    %v180 = vld [vmem:[#allocation8 + $0x50] sm:$0xff]
    %v181 = vld [vmem:[#allocation8 + $0x58] sm:$0xff]
    %v182 = vld [vmem:[#allocation8 + $0x60] sm:$0xff]
    %v183 = vld [vmem:[#allocation8 + $0x68] sm:$0xff]
    %v184 = vld [vmem:[#allocation8 + $0x70] sm:$0xff]
    %v185 = vld [vmem:[#allocation8 + $0x78] sm:$0xff]
    %v186 = vld [vmem:[%s4] sm:$0x1]
    %v188 = vlaneseq
    %v189 = vshrl.u32 %v188, 7
    %v190 = vsub.s32 0, %v189
    %v191 = vrot.slane %v186, %v190
    %193 = vmatprep.subr.mxu0 0.0
    %194 = vmatpush1.msra.mxu0 %v185
    %195 = vmatprep.subr.mxu0 0.0
    %196 = vmatpush1.msra.mxu0 %v184
    %197 = vmatprep.subr.mxu0 0.0
    %198 = vmatpush1.msra.mxu0 %v183
    %199 = vmatprep.subr.mxu0 0.0
    %200 = vmatpush1.msra.mxu0 %v182
    %201 = vmatprep.subr.mxu0 0.0
    %202 = vmatpush1.msra.mxu0 %v181
    %203 = vmatprep.subr.mxu0 0.0
    %204 = vmatpush1.msra.mxu0 %v180
    %205 = vmatprep.subr.mxu0 0.0
    %206 = vmatpush1.msra.mxu0 %v179
    %207 = vmatprep.subr.mxu0 0.0
    %208 = vmatpush1.msra.mxu0 %v178
    %209 = vmatprep.subr.mxu0 0.0
    %210 = vmatpush1.msra.mxu0 %v177
    %211 = vmatprep.subr.mxu0 0.0
    %212 = vmatpush1.msra.mxu0 %v176
    %213 = vmatprep.subr.mxu0 0.0
    %214 = vmatpush1.msra.mxu0 %v175
    %215 = vmatprep.subr.mxu0 0.0
    %216 = vmatpush1.msra.mxu0 %v174
    %217 = vmatprep.subr.mxu0 0.0
    %218 = vmatpush1.msra.mxu0 %v173
    %219 = vmatprep.subr.mxu0 0.0
    %220 = vmatpush1.msra.mxu0 %v172
    %221 = vmatprep.subr.mxu0 0.0
    %222 = vmatpush1.msra.mxu0 %v171
    %223 = vmatprep.subr.mxu0 0.0
    %224 = vmatpush1.msra.mxu0 %v170
    %225 = vmatprep.subr.mxu0 0.0
    %226 = vmatpush2.msra.mxu0 0.0
    %227 = vmatprep.subr.mxu0 0.0
    %228 = vmatpush2.msra.mxu0 0.0
    %229 = vmatprep.subr.mxu0 0.0
    %230 = vmatpush2.msra.mxu0 0.0
    %231 = vmatprep.subr.mxu0 0.0
    %232 = vmatpush2.msra.mxu0 0.0
    %233 = vmatprep.subr.mxu0 0.0
    %234 = vmatpush2.msra.mxu0 0.0
    %235 = vmatprep.subr.mxu0 0.0
    %236 = vmatpush2.msra.mxu0 0.0
    %237 = vmatprep.subr.mxu0 0.0
    %238 = vmatpush2.msra.mxu0 0.0
    %239 = vmatprep.subr.mxu0 0.0
    %240 = vmatpush2.msra.mxu0 0.0
    %241 = vmatprep.subr.mxu0 0.0
    %242 = vmatpush2.msra.mxu0 0.0
    %243 = vmatprep.subr.mxu0 0.0
    %244 = vmatpush2.msra.mxu0 0.0
    %245 = vmatprep.subr.mxu0 0.0
    %246 = vmatpush2.msra.mxu0 0.0
    %247 = vmatprep.subr.mxu0 0.0
    %248 = vmatpush2.msra.mxu0 0.0
    %249 = vmatprep.subr.mxu0 0.0
    %250 = vmatpush2.msra.mxu0 0.0
    %251 = vmatprep.subr.mxu0 0.0
    %252 = vmatpush2.msra.mxu0 0.0
    %253 = vmatprep.subr.mxu0 0.0
    %254 = vmatpush2.msra.mxu0 0.0
    %255 = vmatprep.subr.mxu0 0.0
    %256 = vmatpush2.msra.mxu0 0.0
    %257 = vmatprep.mubr.f32.mxu0 0.0
    %258 = vmatmul.mubr.f32.gmra.mxu0 %v168
    %v259 = vpop.f32.mrf.mxu0
    %v260 = vadd.f32 %v191, %v259
    %v261 = vpop.f32.mrf.mxu0
    %262 = vmatprep.mubr.f32.mxu0 0.0
    %263 = vmatmul.mubr.f32.gmra.mxu0 %v169
    %v264 = vpop.f32.mrf.mxu0
    %v265 = vadd.f32 %v191, %v264
    %v266 = vpop.f32.mrf.mxu0
    %267 = vdwg.mxu0
    %v268 = vmul.f32 %v260, 0.01
    %v269 = vmul.f32 %v265, 0.01
    %v270 = vmax.f32 %v260, %v268
    %v271 = vmax.f32 %v265, %v269
    %v272 = vrot.slane %v270, 4
    %v273 = vadd.f32 %v270, %v272
    %v274 = vrot.slane %v273, 2
    %v275 = vadd.f32 %v273, %v274
    %v276 = vrot.slane %v275, 1
    %v277 = vadd.f32 %v275, %v276
    %v278 = vrot.slane %v271, 4
    %v279 = vadd.f32 %v271, %v278
    %v280 = vrot.slane %v279, 2
    %v281 = vadd.f32 %v279, %v280
    %v282 = vrot.slane %v281, 1
    %v283 = vadd.f32 %v281, %v282
    %v284 = vld [vmem:[%s5] sm:$0x1]
    %v286 = vlaneseq
    %v287 = vshrl.u32 %v286, 7
    %v288 = vsub.s32 0, %v287
    %v289 = vrot.slane %v284, %v288
    %v291 = vmul.f32 %v277, %v289
    %v292 = vmul.f32 %v283, %v289
    %v295 = vrot.slane %v292, 7
    %vm296 = vcmask 1041409
    %v297 = vsel %vm296, %v295, %v291
    %vm299 = vcmask 517120
    %v300 = vsel %vm299, %v297, 0.0
    %301 = vadd.xlane.f32.xlu0 %v300
    %v302 = vpop.xlane.xlu0 %301
    %303 = vrot.lane.b32.xlu0 %v297, 64
    %v304 = vpop.permute.xlu0 %303
    %v306 = vsel %vm299, %v304, 0.0
    %307 = vadd.xlane.f32.xlu0 %v306
    %v308 = vpop.xlane.xlu0 %307
    %vm309 = vcmask 7168
    %v310 = vsel %vm309, %v302, %v308
    %v311 = vld [vmem:[#allocation2] sm:$0x1]
    %v312 = vmul.f32 %v311, 8.0
    %v314 = vlaneseq
    %v315 = vshrl.u32 %v314, 7
    %v316 = vsub.s32 0, %v315
    %v317 = vrot.slane %v312, %v316
    %318 = vset.pattern.permute.xlu0 0
    %319 = vperm.xlu0 %318, %v317
    %v320 = vpop.permute.xlu0 %319
    %v322 = vadd.f32 %v310, %v320
    %vm323 = vcmask 9216
    %324 = vst.msk [vmem:[#allocation9] sm:$0x3] %vm323, %v322
    // Predicated region
    $region42: #{tpu_custom_call.1} parent=1 // pred_check
      _
    $region43: #{tpu_custom_call.1} parent=1 // pred_check_branch
      %326 = sbr.rel (0) target = $region45
    $region44: #{tpu_custom_call.1} parent=1 // pred_region
      %s328 = ssub.s32 32, 32
      %329 = vsyncadd [#allocation5], %s328
      %s331 = sshll.u32 [#allocation9], 4
      %s332 = int_to_ptr.vmem [resolvable:$true] %s331
      %334 = dma.vmem_to_hbm [thread:$0]  %s332, 32, %s7, [#allocation5]
    $region45: #{tpu_custom_call.1} parent=1 // pred_fallthru
      _
    // Predicated region
    $region46: #{tpu_custom_call.1} parent=1 // pred_check
      _
    $region47: #{tpu_custom_call.1} parent=1 // pred_check_branch
      %336 = sbr.rel (0) target = $region49
    $region48: #{tpu_custom_call.1} parent=1 // pred_region
      %337 = dma.done [#allocation5], 32
    $region49: #{tpu_custom_call.1} parent=1 // pred_fallthru
      _
    %338 = vsyncpa [#allocation4], 1
    %339 = vsyncpa [#allocation7], 1
    %340 = vsyncpa [#allocation5], 1

</llo_original>
